<compile_context>
chip_gen: v7x
topology: tpu7x:2x2x1
jax: 0.10.0
libtpu: 0.0.40
codegen_flags: <defaults>
</compile_context>

<pallas_src>
import functools

import jax
import jax.numpy as jnp
from jax import lax
from jax.experimental import pallas as pl
from jax.experimental.pallas import tpu as pltpu


def _round_up(v, m):
    return ((v + m - 1) // m) * m


def _rnn_readout_kernel(alpha, T, Bp,
                        x_ref, win_ref, wrec_ref, b_ref, wout_ref,
                        out_ref, hid_ref, xin_ref):
    """Single invocation, whole (padded) sequence resident in VMEM.

    x_ref:    (T*Bp, n_in)   time-major, rows flattened as (t, b)
    win_ref:  (n_in, Np)     Np = n_rnn padded to 128 lanes
    wrec_ref: (Np, Np)
    b_ref:    (1, Np)
    wout_ref: (Np, Nop)      Nop = n_out padded to 128 lanes
    out_ref:  (T*Bp, Nop)
    hid_ref:  (T*Bp, Np)
    xin_ref:  (T*Bp, Np)     VMEM scratch for the hoisted input projection
    """
    Np = wrec_ref.shape[0]

    # Hoist the input projection + bias off the sequential critical path:
    # one batched matmul for all timesteps, parked in VMEM scratch.
    xin_ref[...] = (
        jnp.dot(x_ref[...], win_ref[...], preferred_element_type=jnp.float32)
        + b_ref[...])                                      # (T*Bp, Np)

    wrec = wrec_ref[...]
    h = jnp.zeros((Bp, Np), jnp.float32)                   # hidden0 = zeros

    for t in range(T):                                      # static, fully unrolled
        lo, hi = t * Bp, (t + 1) * Bp                       # static, sublane-aligned
        pre = xin_ref[lo:hi, :] + jnp.dot(
            h, wrec, preferred_element_type=jnp.float32)
        h = (1.0 - alpha) * h + alpha * jnp.maximum(pre, 0.0)
        hid_ref[lo:hi, :] = h                               # streamed, lane-dense store

    # Batched readout: single MXU push + single contiguous lane-dense store.
    out_ref[...] = jnp.dot(hid_ref[...], wout_ref[...],
                           preferred_element_type=jnp.float32)


def model_forward(x, w_in, w_rec, b_rec, w_out, *, alpha):
    """x: [T, B, n_input] -> (output [T, B, n_out], hidden [T, B, n_rnn])."""
    T, B, n_in = x.shape
    n_rnn = w_rec.shape[0]
    n_out = w_out.shape[1]

    # Sublane-pad batch; lane-pad hidden/output dims to 128 so all stores are
    # unmasked. Zero padding keeps the recurrence exact: padded hidden lanes
    # see zero input, zero bias and zero recurrent weight, so they stay 0;
    # padded batch rows are independent (row-wise matmuls) and sliced away.
    Bp = _round_up(B, 8)
    Np = _round_up(n_rnn, 128)
    Nop = _round_up(n_out, 128)

    if Bp != B:
        x = jnp.pad(x, ((0, 0), (0, Bp - B), (0, 0)))
    x2d = x.reshape(T * Bp, n_in)

    w_in_p = jnp.pad(w_in, ((0, 0), (0, Np - n_rnn)))
    w_rec_p = jnp.pad(w_rec, ((0, Np - n_rnn), (0, Np - n_rnn)))
    b_rec_p = jnp.pad(b_rec, ((0, 0), (0, Np - n_rnn)))
    w_out_p = jnp.pad(w_out, ((0, Np - n_rnn), (0, Nop - n_out)))

    kernel = functools.partial(_rnn_readout_kernel, float(alpha), T, Bp)
    vmem = pl.BlockSpec(memory_space=pltpu.MemorySpace.VMEM)

    out2d, hid2d = pl.pallas_call(
        kernel,
        out_shape=(
            jax.ShapeDtypeStruct((T * Bp, Nop), jnp.float32),
            jax.ShapeDtypeStruct((T * Bp, Np), jnp.float32),
        ),
        in_specs=[vmem, vmem, vmem, vmem, vmem],
        out_specs=(vmem, vmem),
        scratch_shapes=[pltpu.VMEM((T * Bp, Np), jnp.float32)],
    )(x2d, w_in_p, w_rec_p, b_rec_p, w_out_p)

    out = out2d.reshape(T, Bp, Nop)[:, :B, :n_out]
    hid = hid2d.reshape(T, Bp, Np)[:, :B, :n_rnn]
    return out, hid


def _reference(x, w_in, w_rec, b_rec, w_out, *, alpha):
    def step(h, x_t):
        pre = x_t @ w_in + h @ w_rec + b_rec[0]
        h_new = (1.0 - alpha) * h + alpha * jnp.maximum(pre, 0.0)
        return h_new, h_new

    h0 = jnp.zeros((x.shape[1], w_rec.shape[0]), jnp.float32)
    _, hid = lax.scan(step, h0, x)
    return hid @ w_out, hid


if __name__ == "__main__":
    # hp: n_input=16, n_rnn=32, n_output=8, decay(alpha)=0.2, num_layers=1
    T, B, n_in, n_rnn, n_out = 8, 4, 16, 32, 8
    alpha = 0.2

    key = jax.random.PRNGKey(0)
    kx, k1, k2, k3, k4 = jax.random.split(key, 5)
    x = jax.random.normal(kx, (T, B, n_in), dtype=jnp.float32)
    w_in = jax.random.normal(k1, (n_in, n_rnn), dtype=jnp.float32) * 0.1
    w_rec = jax.random.normal(k2, (n_rnn, n_rnn), dtype=jnp.float32) * 0.1
    b_rec = jax.random.normal(k3, (1, n_rnn), dtype=jnp.float32) * 0.1
    w_out = jax.random.normal(k4, (n_rnn, n_out), dtype=jnp.float32) * 0.1

    out, hid = model_forward(x, w_in, w_rec, b_rec, w_out, alpha=alpha)
    jax.block_until_ready((out, hid))

    ref_out, ref_hid = _reference(x, w_in, w_rec, b_rec, w_out, alpha=alpha)
    assert out.shape == (T, B, n_out) and hid.shape == (T, B, n_rnn)
    assert jnp.allclose(out, ref_out, atol=1e-5, rtol=1e-5)
    assert jnp.allclose(hid, ref_hid, atol=1e-5, rtol=1e-5)

    print("KERNEL_OK")
</pallas_src>

<mosaic_0001>
module attributes {stable_mosaic.version = 11 : i64} {
  func.func @_rnn_readout_kernel(%arg0: memref<64x16xf32, #tpu.memory_space<vmem>>, %arg1: memref<16x128xf32, #tpu.memory_space<vmem>>, %arg2: memref<128x128xf32, #tpu.memory_space<vmem>>, %arg3: memref<1x128xf32, #tpu.memory_space<vmem>>, %arg4: memref<128x128xf32, #tpu.memory_space<vmem>>, %arg5: memref<64x128xf32, #tpu.memory_space<vmem>>, %arg6: memref<64x128xf32, #tpu.memory_space<vmem>>, %arg7: memref<64x128xf32, #tpu.memory_space<vmem>>) attributes {dimension_semantics = [], scalar_prefetch = 0 : i64, scratch_operands = 1 : i64, tpu.core_type = #tpu.core_type<tc>} {
    %c0 = arith.constant 0 : index
    %c0_0 = arith.constant 0 : index
    %0 = vector.load %arg0[%c0, %c0_0] : memref<64x16xf32, #tpu.memory_space<vmem>>, vector<64x16xf32>
    %c0_1 = arith.constant 0 : index
    %c0_2 = arith.constant 0 : index
    %1 = vector.load %arg1[%c0_1, %c0_2] : memref<16x128xf32, #tpu.memory_space<vmem>>, vector<16x128xf32>
    %cst = arith.constant dense<0.000000e+00> : vector<64x128xf32>
    %2 = tpu.matmul %0, %1, %cst {dimension_numbers = #tpu.dot_dimension_numbers<[1], [0], [0], [1], [0, 0, 1, 1], [], []>} : vector<64x16xf32>, vector<16x128xf32>, vector<64x128xf32> -> vector<64x128xf32>
    %c0_3 = arith.constant 0 : index
    %c0_4 = arith.constant 0 : index
    %3 = vector.load %arg3[%c0_3, %c0_4] : memref<1x128xf32, #tpu.memory_space<vmem>>, vector<1x128xf32>
    %4 = vector.broadcast %3 : vector<1x128xf32> to vector<64x128xf32>
    %5 = arith.addf %2, %4 : vector<64x128xf32>
    %c0_5 = arith.constant 0 : index
    %c0_6 = arith.constant 0 : index
    %6 = vector.load %arg7[%c0_5, %c0_6] : memref<64x128xf32, #tpu.memory_space<vmem>>, vector<64x128xf32>
    tpu.vector_store %arg7[%c0_5, %c0_6], %5 {strides = array<i32>} : memref<64x128xf32, #tpu.memory_space<vmem>>, vector<64x128xf32>,
    %c0_7 = arith.constant 0 : index
    %c0_8 = arith.constant 0 : index
    %7 = vector.load %arg2[%c0_7, %c0_8] : memref<128x128xf32, #tpu.memory_space<vmem>>, vector<128x128xf32>
    %cst_9 = arith.constant 0.000000e+00 : f32
    %8 = vector.broadcast %cst_9 : f32 to vector<8x128xf32>
    %c0_10 = arith.constant 0 : index
    %c0_11 = arith.constant 0 : index
    %9 = vector.load %arg7[%c0_10, %c0_11] : memref<64x128xf32, #tpu.memory_space<vmem>>, vector<8x128xf32>
    %cst_12 = arith.constant dense<0.000000e+00> : vector<8x128xf32>
    %10 = tpu.matmul %8, %7, %cst_12 {dimension_numbers = #tpu.dot_dimension_numbers<[1], [0], [0], [1], [0, 0, 1, 1], [], []>} : vector<8x128xf32>, vector<128x128xf32>, vector<8x128xf32> -> vector<8x128xf32>
    %11 = arith.addf %9, %10 : vector<8x128xf32>
    %cst_13 = arith.constant 8.000000e-01 : f32
    %12 = vector.broadcast %cst_13 : f32 to vector<8x128xf32>
    %13 = arith.mulf %12, %8 : vector<8x128xf32>
    %cst_14 = arith.constant 0.000000e+00 : f32
    %14 = vector.broadcast %cst_14 : f32 to vector<8x128xf32>
    %15 = arith.maximumf %11, %14 : vector<8x128xf32>
    %cst_15 = arith.constant 2.000000e-01 : f32
    %16 = vector.broadcast %cst_15 : f32 to vector<8x128xf32>
    %17 = arith.mulf %16, %15 : vector<8x128xf32>
    %18 = arith.addf %13, %17 : vector<8x128xf32>
    %c0_16 = arith.constant 0 : index
    %c0_17 = arith.constant 0 : index
    %19 = vector.load %arg6[%c0_16, %c0_17] : memref<64x128xf32, #tpu.memory_space<vmem>>, vector<8x128xf32>
    tpu.vector_store %arg6[%c0_16, %c0_17], %18 {strides = array<i32>} : memref<64x128xf32, #tpu.memory_space<vmem>>, vector<8x128xf32>,
    %c8 = arith.constant 8 : index
    %c0_18 = arith.constant 0 : index
    %20 = vector.load %arg7[%c8, %c0_18] : memref<64x128xf32, #tpu.memory_space<vmem>>, vector<8x128xf32>
    %cst_19 = arith.constant dense<0.000000e+00> : vector<8x128xf32>
    %21 = tpu.matmul %18, %7, %cst_19 {dimension_numbers = #tpu.dot_dimension_numbers<[1], [0], [0], [1], [0, 0, 1, 1], [], []>} : vector<8x128xf32>, vector<128x128xf32>, vector<8x128xf32> -> vector<8x128xf32>
    %22 = arith.addf %20, %21 : vector<8x128xf32>
    %cst_20 = arith.constant 8.000000e-01 : f32
    %23 = vector.broadcast %cst_20 : f32 to vector<8x128xf32>
    %24 = arith.mulf %23, %18 : vector<8x128xf32>
    %cst_21 = arith.constant 0.000000e+00 : f32
    %25 = vector.broadcast %cst_21 : f32 to vector<8x128xf32>
    %26 = arith.maximumf %22, %25 : vector<8x128xf32>
    %cst_22 = arith.constant 2.000000e-01 : f32
    %27 = vector.broadcast %cst_22 : f32 to vector<8x128xf32>
    %28 = arith.mulf %27, %26 : vector<8x128xf32>
    %29 = arith.addf %24, %28 : vector<8x128xf32>
    %c8_23 = arith.constant 8 : index
    %c0_24 = arith.constant 0 : index
    %30 = vector.load %arg6[%c8_23, %c0_24] : memref<64x128xf32, #tpu.memory_space<vmem>>, vector<8x128xf32>
    tpu.vector_store %arg6[%c8_23, %c0_24], %29 {strides = array<i32>} : memref<64x128xf32, #tpu.memory_space<vmem>>, vector<8x128xf32>,
    %c16 = arith.constant 16 : index
    %c0_25 = arith.constant 0 : index
    %31 = vector.load %arg7[%c16, %c0_25] : memref<64x128xf32, #tpu.memory_space<vmem>>, vector<8x128xf32>
    %cst_26 = arith.constant dense<0.000000e+00> : vector<8x128xf32>
    %32 = tpu.matmul %29, %7, %cst_26 {dimension_numbers = #tpu.dot_dimension_numbers<[1], [0], [0], [1], [0, 0, 1, 1], [], []>} : vector<8x128xf32>, vector<128x128xf32>, vector<8x128xf32> -> vector<8x128xf32>
    %33 = arith.addf %31, %32 : vector<8x128xf32>
    %cst_27 = arith.constant 8.000000e-01 : f32
    %34 = vector.broadcast %cst_27 : f32 to vector<8x128xf32>
    %35 = arith.mulf %34, %29 : vector<8x128xf32>
    %cst_28 = arith.constant 0.000000e+00 : f32
    %36 = vector.broadcast %cst_28 : f32 to vector<8x128xf32>
    %37 = arith.maximumf %33, %36 : vector<8x128xf32>
    %cst_29 = arith.constant 2.000000e-01 : f32
    %38 = vector.broadcast %cst_29 : f32 to vector<8x128xf32>
    %39 = arith.mulf %38, %37 : vector<8x128xf32>
    %40 = arith.addf %35, %39 : vector<8x128xf32>
    %c16_30 = arith.constant 16 : index
    %c0_31 = arith.constant 0 : index
    %41 = vector.load %arg6[%c16_30, %c0_31] : memref<64x128xf32, #tpu.memory_space<vmem>>, vector<8x128xf32>
    tpu.vector_store %arg6[%c16_30, %c0_31], %40 {strides = array<i32>} : memref<64x128xf32, #tpu.memory_space<vmem>>, vector<8x128xf32>,
    %c24 = arith.constant 24 : index
    %c0_32 = arith.constant 0 : index
    %42 = vector.load %arg7[%c24, %c0_32] : memref<64x128xf32, #tpu.memory_space<vmem>>, vector<8x128xf32>
    %cst_33 = arith.constant dense<0.000000e+00> : vector<8x128xf32>
    %43 = tpu.matmul %40, %7, %cst_33 {dimension_numbers = #tpu.dot_dimension_numbers<[1], [0], [0], [1], [0, 0, 1, 1], [], []>} : vector<8x128xf32>, vector<128x128xf32>, vector<8x128xf32> -> vector<8x128xf32>
    %44 = arith.addf %42, %43 : vector<8x128xf32>
    %cst_34 = arith.constant 8.000000e-01 : f32
    %45 = vector.broadcast %cst_34 : f32 to vector<8x128xf32>
    %46 = arith.mulf %45, %40 : vector<8x128xf32>
    %cst_35 = arith.constant 0.000000e+00 : f32
    %47 = vector.broadcast %cst_35 : f32 to vector<8x128xf32>
    %48 = arith.maximumf %44, %47 : vector<8x128xf32>
    %cst_36 = arith.constant 2.000000e-01 : f32
    %49 = vector.broadcast %cst_36 : f32 to vector<8x128xf32>
    %50 = arith.mulf %49, %48 : vector<8x128xf32>
    %51 = arith.addf %46, %50 : vector<8x128xf32>
    %c24_37 = arith.constant 24 : index
    %c0_38 = arith.constant 0 : index
    %52 = vector.load %arg6[%c24_37, %c0_38] : memref<64x128xf32, #tpu.memory_space<vmem>>, vector<8x128xf32>
    tpu.vector_store %arg6[%c24_37, %c0_38], %51 {strides = array<i32>} : memref<64x128xf32, #tpu.memory_space<vmem>>, vector<8x128xf32>,
    %c32 = arith.constant 32 : index
    %c0_39 = arith.constant 0 : index
    %53 = vector.load %arg7[%c32, %c0_39] : memref<64x128xf32, #tpu.memory_space<vmem>>, vector<8x128xf32>
    %cst_40 = arith.constant dense<0.000000e+00> : vector<8x128xf32>
    %54 = tpu.matmul %51, %7, %cst_40 {dimension_numbers = #tpu.dot_dimension_numbers<[1], [0], [0], [1], [0, 0, 1, 1], [], []>} : vector<8x128xf32>, vector<128x128xf32>, vector<8x128xf32> -> vector<8x128xf32>
    %55 = arith.addf %53, %54 : vector<8x128xf32>
    %cst_41 = arith.constant 8.000000e-01 : f32
    %56 = vector.broadcast %cst_41 : f32 to vector<8x128xf32>
    %57 = arith.mulf %56, %51 : vector<8x128xf32>
    %cst_42 = arith.constant 0.000000e+00 : f32
    %58 = vector.broadcast %cst_42 : f32 to vector<8x128xf32>
    %59 = arith.maximumf %55, %58 : vector<8x128xf32>
    %cst_43 = arith.constant 2.000000e-01 : f32
    %60 = vector.broadcast %cst_43 : f32 to vector<8x128xf32>
    %61 = arith.mulf %60, %59 : vector<8x128xf32>
    %62 = arith.addf %57, %61 : vector<8x128xf32>
    %c32_44 = arith.constant 32 : index
    %c0_45 = arith.constant 0 : index
    %63 = vector.load %arg6[%c32_44, %c0_45] : memref<64x128xf32, #tpu.memory_space<vmem>>, vector<8x128xf32>
    tpu.vector_store %arg6[%c32_44, %c0_45], %62 {strides = array<i32>} : memref<64x128xf32, #tpu.memory_space<vmem>>, vector<8x128xf32>,
    %c40 = arith.constant 40 : index
    %c0_46 = arith.constant 0 : index
    %64 = vector.load %arg7[%c40, %c0_46] : memref<64x128xf32, #tpu.memory_space<vmem>>, vector<8x128xf32>
    %cst_47 = arith.constant dense<0.000000e+00> : vector<8x128xf32>
    %65 = tpu.matmul %62, %7, %cst_47 {dimension_numbers = #tpu.dot_dimension_numbers<[1], [0], [0], [1], [0, 0, 1, 1], [], []>} : vector<8x128xf32>, vector<128x128xf32>, vector<8x128xf32> -> vector<8x128xf32>
    %66 = arith.addf %64, %65 : vector<8x128xf32>
    %cst_48 = arith.constant 8.000000e-01 : f32
    %67 = vector.broadcast %cst_48 : f32 to vector<8x128xf32>
    %68 = arith.mulf %67, %62 : vector<8x128xf32>
    %cst_49 = arith.constant 0.000000e+00 : f32
    %69 = vector.broadcast %cst_49 : f32 to vector<8x128xf32>
    %70 = arith.maximumf %66, %69 : vector<8x128xf32>
    %cst_50 = arith.constant 2.000000e-01 : f32
    %71 = vector.broadcast %cst_50 : f32 to vector<8x128xf32>
    %72 = arith.mulf %71, %70 : vector<8x128xf32>
    %73 = arith.addf %68, %72 : vector<8x128xf32>
    %c40_51 = arith.constant 40 : index
    %c0_52 = arith.constant 0 : index
    %74 = vector.load %arg6[%c40_51, %c0_52] : memref<64x128xf32, #tpu.memory_space<vmem>>, vector<8x128xf32>
    tpu.vector_store %arg6[%c40_51, %c0_52], %73 {strides = array<i32>} : memref<64x128xf32, #tpu.memory_space<vmem>>, vector<8x128xf32>,
    %c48 = arith.constant 48 : index
    %c0_53 = arith.constant 0 : index
    %75 = vector.load %arg7[%c48, %c0_53] : memref<64x128xf32, #tpu.memory_space<vmem>>, vector<8x128xf32>
    %cst_54 = arith.constant dense<0.000000e+00> : vector<8x128xf32>
    %76 = tpu.matmul %73, %7, %cst_54 {dimension_numbers = #tpu.dot_dimension_numbers<[1], [0], [0], [1], [0, 0, 1, 1], [], []>} : vector<8x128xf32>, vector<128x128xf32>, vector<8x128xf32> -> vector<8x128xf32>
    %77 = arith.addf %75, %76 : vector<8x128xf32>
    %cst_55 = arith.constant 8.000000e-01 : f32
    %78 = vector.broadcast %cst_55 : f32 to vector<8x128xf32>
    %79 = arith.mulf %78, %73 : vector<8x128xf32>
    %cst_56 = arith.constant 0.000000e+00 : f32
    %80 = vector.broadcast %cst_56 : f32 to vector<8x128xf32>
    %81 = arith.maximumf %77, %80 : vector<8x128xf32>
    %cst_57 = arith.constant 2.000000e-01 : f32
    %82 = vector.broadcast %cst_57 : f32 to vector<8x128xf32>
    %83 = arith.mulf %82, %81 : vector<8x128xf32>
    %84 = arith.addf %79, %83 : vector<8x128xf32>
    %c48_58 = arith.constant 48 : index
    %c0_59 = arith.constant 0 : index
    %85 = vector.load %arg6[%c48_58, %c0_59] : memref<64x128xf32, #tpu.memory_space<vmem>>, vector<8x128xf32>
    tpu.vector_store %arg6[%c48_58, %c0_59], %84 {strides = array<i32>} : memref<64x128xf32, #tpu.memory_space<vmem>>, vector<8x128xf32>,
    %c56 = arith.constant 56 : index
    %c0_60 = arith.constant 0 : index
    %86 = vector.load %arg7[%c56, %c0_60] : memref<64x128xf32, #tpu.memory_space<vmem>>, vector<8x128xf32>
    %cst_61 = arith.constant dense<0.000000e+00> : vector<8x128xf32>
    %87 = tpu.matmul %84, %7, %cst_61 {dimension_numbers = #tpu.dot_dimension_numbers<[1], [0], [0], [1], [0, 0, 1, 1], [], []>} : vector<8x128xf32>, vector<128x128xf32>, vector<8x128xf32> -> vector<8x128xf32>
    %88 = arith.addf %86, %87 : vector<8x128xf32>
    %cst_62 = arith.constant 8.000000e-01 : f32
    %89 = vector.broadcast %cst_62 : f32 to vector<8x128xf32>
    %90 = arith.mulf %89, %84 : vector<8x128xf32>
    %cst_63 = arith.constant 0.000000e+00 : f32
    %91 = vector.broadcast %cst_63 : f32 to vector<8x128xf32>
    %92 = arith.maximumf %88, %91 : vector<8x128xf32>
    %cst_64 = arith.constant 2.000000e-01 : f32
    %93 = vector.broadcast %cst_64 : f32 to vector<8x128xf32>
    %94 = arith.mulf %93, %92 : vector<8x128xf32>
    %95 = arith.addf %90, %94 : vector<8x128xf32>
    %c56_65 = arith.constant 56 : index
    %c0_66 = arith.constant 0 : index
    %96 = vector.load %arg6[%c56_65, %c0_66] : memref<64x128xf32, #tpu.memory_space<vmem>>, vector<8x128xf32>
    tpu.vector_store %arg6[%c56_65, %c0_66], %95 {strides = array<i32>} : memref<64x128xf32, #tpu.memory_space<vmem>>, vector<8x128xf32>,
    %c0_67 = arith.constant 0 : index
    %c0_68 = arith.constant 0 : index
    %97 = vector.load %arg6[%c0_67, %c0_68] : memref<64x128xf32, #tpu.memory_space<vmem>>, vector<64x128xf32>
    %c0_69 = arith.constant 0 : index
    %c0_70 = arith.constant 0 : index
    %98 = vector.load %arg4[%c0_69, %c0_70] : memref<128x128xf32, #tpu.memory_space<vmem>>, vector<128x128xf32>
    %cst_71 = arith.constant dense<0.000000e+00> : vector<64x128xf32>
    %99 = tpu.matmul %97, %98, %cst_71 {dimension_numbers = #tpu.dot_dimension_numbers<[1], [0], [0], [1], [0, 0, 1, 1], [], []>} : vector<64x128xf32>, vector<128x128xf32>, vector<64x128xf32> -> vector<64x128xf32>
    %c0_72 = arith.constant 0 : index
    %c0_73 = arith.constant 0 : index
    %100 = vector.load %arg5[%c0_72, %c0_73] : memref<64x128xf32, #tpu.memory_space<vmem>>, vector<64x128xf32>
    tpu.vector_store %arg5[%c0_72, %c0_73], %99 {strides = array<i32>} : memref<64x128xf32, #tpu.memory_space<vmem>>, vector<64x128xf32>,
    return
  }
}

</mosaic_0001>

<llo_original>
// kernel: tpu_custom_call.1
$region0: #{tpu_custom_call.1}
  #allocation0 [shape = 'u32[]', space=smem, size = 0x4, offset = 0x4, fixed_abs, tag = 'smem constant byte address 0x4 - core index']
  #allocation1 [shape = 'u32[144,128]{1,0:T(1,128)}', space=vmem, size = 0x12000, scoped, tag = 'internal scratch']
  #allocation2 [shape = 'f32[64,128]{1,0:T(8,128)}', space=vmem, size = 0x8000, scoped, tag = 'scratch operand']
  %s0 = inlined_call_operand.vmem [shape: f32[64,16], index: 0, kind: input, shape index: {}]
  %s1 = inlined_call_operand.vmem [shape: f32[16,128], index: 1, kind: input, shape index: {}]
  %s2 = inlined_call_operand.hbm [shape: f32[128,128], index: 2, kind: input, shape index: {}]
  %s3 = inlined_call_operand.vmem [shape: f32[1,128], index: 3, kind: input, shape index: {}]
  %s4 = inlined_call_operand.hbm [shape: f32[128,128], index: 4, kind: input, shape index: {}]
  %s5 = inlined_call_operand.hbm [shape: f32[64,128], index: 5, kind: output, shape index: {0}]
  %s6 = inlined_call_operand.hbm [shape: f32[64,128], index: 6, kind: output, shape index: {1}]
  %7 = xla_tuple %s5, %s6
  %s8 = sld [smem:[#allocation0]]
  $region46: #{tpu_custom_call.1} parent=0
    _
  %s10 = ssub.s32 1, %s8
  %s11 = scalar_select 0, %s10, %s8
  $region1: #{tpu_custom_call.1} parent=0
    #allocation3 [shape = 'u8[65536]{0}', space=vmem, size = 0x10000, scoped, tag = 'input window, operand 2, single buffered']
    #allocation4 [shape = 's32[1]{0}', space=sflag, size = 0x4, scoped, tag = 'scoped memory for tpu_custom_call.1']
    #allocation5 [shape = 's32[1]{0}', space=sflag, size = 0x4, scoped, tag = 'scoped memory for tpu_custom_call.1']
    #allocation6 [shape = 'u8[65536]{0}', space=vmem, size = 0x10000, scoped, tag = 'input window, operand 4, single buffered']
    #allocation7 [shape = 's32[1]{0}', space=sflag, size = 0x4, scoped, tag = 'scoped memory for tpu_custom_call.1']
    #allocation8 [shape = 'u8[32768]{0}', space=vmem, size = 0x8000, scoped, tag = 'output window, operand 0, single buffered']
    #allocation9 [shape = 'u8[32768]{0}', space=vmem, size = 0x8000, scoped, tag = 'output window, operand 1, single buffered']
    #allocation10 [shape = 's32[1]{0}', space=sflag, size = 0x4, scoped, tag = 'scoped memory for tpu_custom_call.1']
    %12 = vsyncpa [#allocation4], 0
    %13 = vsyncpa [#allocation7], 0
    %14 = vsyncpa [#allocation5], 0
    %15 = vsyncpa [#allocation10], 0
    // Predicated region
    $region2: #{tpu_custom_call.1} parent=1 // pred_check
      _
    $region3: #{tpu_custom_call.1} parent=1 // pred_check_branch
      %17 = sbr.rel (0) target = $region5
    $region4: #{tpu_custom_call.1} parent=1 // pred_region
      _
    $region5: #{tpu_custom_call.1} parent=1 // pred_fallthru
      _
    // Predicated region
    $region6: #{tpu_custom_call.1} parent=1 // pred_check
      _
    $region7: #{tpu_custom_call.1} parent=1 // pred_check_branch
      %19 = sbr.rel (0) target = $region9
    $region8: #{tpu_custom_call.1} parent=1 // pred_region
      _
    $region9: #{tpu_custom_call.1} parent=1 // pred_fallthru
      _
    // Predicated region
    $region10: #{tpu_custom_call.1} parent=1 // pred_check
      _
    $region11: #{tpu_custom_call.1} parent=1 // pred_check_branch
      %21 = sbr.rel (0) target = $region13
    $region12: #{tpu_custom_call.1} parent=1 // pred_region
      %s23 = ssub.s32 2048, 2048
      %24 = vsyncadd [#allocation4], %s23
      %s25 = sshll.u32 [#allocation3], 4
      %s26 = int_to_ptr.vmem [resolvable:$true] %s25
      %31 = dma.hbm_to_vmem [thread:$0]  %s2, 2048, %s26, [#allocation4], 128, 128, 8
    $region13: #{tpu_custom_call.1} parent=1 // pred_fallthru
      _
    // Predicated region
    $region14: #{tpu_custom_call.1} parent=1 // pred_check
      _
    $region15: #{tpu_custom_call.1} parent=1 // pred_check_branch
      %33 = sbr.rel (0) target = $region17
    $region16: #{tpu_custom_call.1} parent=1 // pred_region
      _
    $region17: #{tpu_custom_call.1} parent=1 // pred_fallthru
      _
    // Predicated region
    $region18: #{tpu_custom_call.1} parent=1 // pred_check
      _
    $region19: #{tpu_custom_call.1} parent=1 // pred_check_branch
      %35 = sbr.rel (0) target = $region21
    $region20: #{tpu_custom_call.1} parent=1 // pred_region
      %s37 = ssub.s32 2048, 2048
      %38 = vsyncadd [#allocation7], %s37
      %s39 = sshll.u32 [#allocation6], 4
      %s40 = int_to_ptr.vmem [resolvable:$true] %s39
      %45 = dma.hbm_to_vmem [thread:$0]  %s4, 2048, %s40, [#allocation7], 128, 128, 8
    $region21: #{tpu_custom_call.1} parent=1 // pred_fallthru
      _
    // Predicated region
    $region22: #{tpu_custom_call.1} parent=1 // pred_check
      _
    $region23: #{tpu_custom_call.1} parent=1 // pred_check_branch
      %47 = sbr.rel (0) target = $region25
    $region24: #{tpu_custom_call.1} parent=1 // pred_region
      %48 = dma.done [#allocation4], 2048
    $region25: #{tpu_custom_call.1} parent=1 // pred_fallthru
      _
    // Predicated region
    $region26: #{tpu_custom_call.1} parent=1 // pred_check
      _
    $region27: #{tpu_custom_call.1} parent=1 // pred_check_branch
      %50 = sbr.rel (0) target = $region29
    $region28: #{tpu_custom_call.1} parent=1 // pred_region
      %51 = dma.done [#allocation7], 2048
    $region29: #{tpu_custom_call.1} parent=1 // pred_fallthru
      _
    %v52 = vld [vmem:[%s0] sm:$0xff]
    %v53 = vld [vmem:[%s0 + $0x8] sm:$0xff]
    %v54 = vld [vmem:[%s0 + $0x10] sm:$0xff]
    %v55 = vld [vmem:[%s0 + $0x18] sm:$0xff]
    %v56 = vld [vmem:[%s0 + $0x20] sm:$0xff]
    %v57 = vld [vmem:[%s0 + $0x28] sm:$0xff]
    %v58 = vld [vmem:[%s0 + $0x30] sm:$0xff]
    %v59 = vld [vmem:[%s0 + $0x38] sm:$0xff]
    %v60 = vld [vmem:[%s1] sm:$0xff]
    %v61 = vld [vmem:[%s1 + $0x8] sm:$0xff]
    %v62 = vld [vmem:[%s3] sm:$0x1]
    %v64 = vlaneseq
    %v65 = vshrl.u32 %v64, 7
    %v66 = vsub.s32 0, %v65
    %v67 = vrot.slane %v62, %v66
    %vm69 = vcmask 130048
    %v71 = vsel %vm69, %v52, 0
    %v74 = vsel %vm69, %v53, 0
    %v77 = vsel %vm69, %v54, 0
    %v80 = vsel %vm69, %v55, 0
    %v83 = vsel %vm69, %v56, 0
    %v86 = vsel %vm69, %v57, 0
    %v89 = vsel %vm69, %v58, 0
    %v92 = vsel %vm69, %v59, 0
    %94 = vmatprep.subr.mxu0 0.0
    %95 = vmatpush1.msra.mxu0 %v60
    %96 = vmatprep.subr.mxu0 0.0
    %97 = vmatpush1.msra.mxu0 %v61
    %98 = vmatprep.subr.mxu0 0.0
    %99 = vmatpush1.msra.mxu0 0.0
    %100 = vmatprep.subr.mxu0 0.0
    %101 = vmatpush1.msra.mxu0 0.0
    %102 = vmatprep.subr.mxu0 0.0
    %103 = vmatpush1.msra.mxu0 0.0
    %104 = vmatprep.subr.mxu0 0.0
    %105 = vmatpush1.msra.mxu0 0.0
    %106 = vmatprep.subr.mxu0 0.0
    %107 = vmatpush1.msra.mxu0 0.0
    %108 = vmatprep.subr.mxu0 0.0
    %109 = vmatpush1.msra.mxu0 0.0
    %110 = vmatprep.subr.mxu0 0.0
    %111 = vmatpush1.msra.mxu0 0.0
    %112 = vmatprep.subr.mxu0 0.0
    %113 = vmatpush1.msra.mxu0 0.0
    %114 = vmatprep.subr.mxu0 0.0
    %115 = vmatpush1.msra.mxu0 0.0
    %116 = vmatprep.subr.mxu0 0.0
    %117 = vmatpush1.msra.mxu0 0.0
    %118 = vmatprep.subr.mxu0 0.0
    %119 = vmatpush1.msra.mxu0 0.0
    %120 = vmatprep.subr.mxu0 0.0
    %121 = vmatpush1.msra.mxu0 0.0
    %122 = vmatprep.subr.mxu0 0.0
    %123 = vmatpush1.msra.mxu0 0.0
    %124 = vmatprep.subr.mxu0 0.0
    %125 = vmatpush1.msra.mxu0 0.0
    %126 = vmatprep.subr.mxu0 0.0
    %127 = vmatpush1.msra.mxu0 0.0
    %128 = vmatprep.subr.mxu0 0.0
    %129 = vmatpush1.msra.mxu0 0.0
    %130 = vmatprep.subr.mxu0 0.0
    %131 = vmatpush1.msra.mxu0 0.0
    %132 = vmatprep.subr.mxu0 0.0
    %133 = vmatpush1.msra.mxu0 0.0
    %134 = vmatprep.subr.mxu0 0.0
    %135 = vmatpush1.msra.mxu0 0.0
    %136 = vmatprep.subr.mxu0 0.0
    %137 = vmatpush1.msra.mxu0 0.0
    %138 = vmatprep.subr.mxu0 0.0
    %139 = vmatpush1.msra.mxu0 0.0
    %140 = vmatprep.subr.mxu0 0.0
    %141 = vmatpush1.msra.mxu0 0.0
    %142 = vmatprep.subr.mxu0 0.0
    %143 = vmatpush1.msra.mxu0 0.0
    %144 = vmatprep.subr.mxu0 0.0
    %145 = vmatpush1.msra.mxu0 0.0
    %146 = vmatprep.subr.mxu0 0.0
    %147 = vmatpush1.msra.mxu0 0.0
    %148 = vmatprep.subr.mxu0 0.0
    %149 = vmatpush1.msra.mxu0 0.0
    %150 = vmatprep.subr.mxu0 0.0
    %151 = vmatpush1.msra.mxu0 0.0
    %152 = vmatprep.subr.mxu0 0.0
    %153 = vmatpush1.msra.mxu0 0.0
    %154 = vmatprep.subr.mxu0 0.0
    %155 = vmatpush1.msra.mxu0 0.0
    %156 = vmatprep.subr.mxu0 0.0
    %157 = vmatpush1.msra.mxu0 0.0
    %158 = vmatprep.mubr.f32.mxu0 0.0
    %159 = vmatmul.mubr.f32.gmra.mrb[0].mxu0 %v71
    %v160 = vpop.f32.mrb[0].mxu0
    %v161 = vadd.f32 %v67, %v160
    %v162 = vpop.f32.mrb[0].mxu0
    %163 = vmatprep.mubr.f32.mxu0 0.0
    %164 = vmatmul.mubr.f32.gmra.mrb[0].mxu0 %v74
    %v165 = vpop.f32.mrb[0].mxu0
    %v166 = vadd.f32 %v67, %v165
    %v167 = vpop.f32.mrb[0].mxu0
    %168 = vmatprep.mubr.f32.mxu0 0.0
    %169 = vmatmul.mubr.f32.gmra.mrb[0].mxu0 %v77
    %v170 = vpop.f32.mrb[0].mxu0
    %v171 = vadd.f32 %v67, %v170
    %v172 = vpop.f32.mrb[0].mxu0
    %173 = vmatprep.mubr.f32.mxu0 0.0
    %174 = vmatmul.mubr.f32.gmra.mrb[0].mxu0 %v80
    %v175 = vpop.f32.mrb[0].mxu0
    %v176 = vadd.f32 %v67, %v175
    %v177 = vpop.f32.mrb[0].mxu0
    %178 = vmatprep.mubr.f32.mxu0 0.0
    %179 = vmatmul.mubr.f32.gmra.mrb[0].mxu0 %v83
    %v180 = vpop.f32.mrb[0].mxu0
    %v181 = vadd.f32 %v67, %v180
    %v182 = vpop.f32.mrb[0].mxu0
    %183 = vmatprep.mubr.f32.mxu0 0.0
    %184 = vmatmul.mubr.f32.gmra.mrb[0].mxu0 %v86
    %v185 = vpop.f32.mrb[0].mxu0
    %v186 = vadd.f32 %v67, %v185
    %v187 = vpop.f32.mrb[0].mxu0
    %188 = vmatprep.mubr.f32.mxu0 0.0
    %189 = vmatmul.mubr.f32.gmra.mrb[0].mxu0 %v89
    %v190 = vpop.f32.mrb[0].mxu0
    %v191 = vadd.f32 %v67, %v190
    %v192 = vpop.f32.mrb[0].mxu0
    %193 = vmatprep.mubr.f32.mxu0 0.0
    %194 = vmatmul.mubr.f32.gmra.mrb[0].mxu0 %v92
    %v195 = vpop.f32.mrb[0].mxu0
    %v196 = vadd.f32 %v67, %v195
    %v197 = vpop.f32.mrb[0].mxu0
    %198 = vdwg.mxu0
    %199 = vst [vmem:[#allocation2] sm:$0xff] %v161
    %200 = vst [vmem:[#allocation2 + $0x8] sm:$0xff] %v166
    %201 = vst [vmem:[#allocation2 + $0x10] sm:$0xff] %v171
    %202 = vst [vmem:[#allocation2 + $0x18] sm:$0xff] %v176
    %203 = vst [vmem:[#allocation2 + $0x20] sm:$0xff] %v181
    %204 = vst [vmem:[#allocation2 + $0x28] sm:$0xff] %v186
    %205 = vst [vmem:[#allocation2 + $0x30] sm:$0xff] %v191
    %206 = vst [vmem:[#allocation2 + $0x38] sm:$0xff] %v196
    %v207 = vld [vmem:[#allocation3] sm:$0xff]
    %v208 = vld [vmem:[#allocation3 + $0x8] sm:$0xff]
    %v209 = vld [vmem:[#allocation3 + $0x10] sm:$0xff]
    %v210 = vld [vmem:[#allocation3 + $0x18] sm:$0xff]
    %v211 = vld [vmem:[#allocation3 + $0x20] sm:$0xff]
    %v212 = vld [vmem:[#allocation3 + $0x28] sm:$0xff]
    %v213 = vld [vmem:[#allocation3 + $0x30] sm:$0xff]
    %v214 = vld [vmem:[#allocation3 + $0x38] sm:$0xff]
    %v215 = vld [vmem:[#allocation3 + $0x40] sm:$0xff]
    %v216 = vld [vmem:[#allocation3 + $0x48] sm:$0xff]
    %v217 = vld [vmem:[#allocation3 + $0x50] sm:$0xff]
    %v218 = vld [vmem:[#allocation3 + $0x58] sm:$0xff]
    %v219 = vld [vmem:[#allocation3 + $0x60] sm:$0xff]
    %v220 = vld [vmem:[#allocation3 + $0x68] sm:$0xff]
    %v221 = vld [vmem:[#allocation3 + $0x70] sm:$0xff]
    %v222 = vld [vmem:[#allocation3 + $0x78] sm:$0xff]
    %v223 = vld [vmem:[#allocation2] sm:$0xff]
    %224 = vmatprep.subr.mxu0 0.0
    %225 = vmatpush1.msra.mxu0 %v207
    %226 = vmatprep.subr.mxu0 0.0
    %227 = vmatpush1.msra.mxu0 %v208
    %228 = vmatprep.subr.mxu0 0.0
    %229 = vmatpush1.msra.mxu0 %v209
    %230 = vmatprep.subr.mxu0 0.0
    %231 = vmatpush1.msra.mxu0 %v210
    %232 = vmatprep.subr.mxu0 0.0
    %233 = vmatpush1.msra.mxu0 %v211
    %234 = vmatprep.subr.mxu0 0.0
    %235 = vmatpush1.msra.mxu0 %v212
    %236 = vmatprep.subr.mxu0 0.0
    %237 = vmatpush1.msra.mxu0 %v213
    %238 = vmatprep.subr.mxu0 0.0
    %239 = vmatpush1.msra.mxu0 %v214
    %240 = vmatprep.subr.mxu0 0.0
    %241 = vmatpush1.msra.mxu0 %v215
    %242 = vmatprep.subr.mxu0 0.0
    %243 = vmatpush1.msra.mxu0 %v216
    %244 = vmatprep.subr.mxu0 0.0
    %245 = vmatpush1.msra.mxu0 %v217
    %246 = vmatprep.subr.mxu0 0.0
    %247 = vmatpush1.msra.mxu0 %v218
    %248 = vmatprep.subr.mxu0 0.0
    %249 = vmatpush1.msra.mxu0 %v219
    %250 = vmatprep.subr.mxu0 0.0
    %251 = vmatpush1.msra.mxu0 %v220
    %252 = vmatprep.subr.mxu0 0.0
    %253 = vmatpush1.msra.mxu0 %v221
    %254 = vmatprep.subr.mxu0 0.0
    %255 = vmatpush1.msra.mxu0 %v222
    %256 = vmatprep.subr.mxu0 0.0
    %257 = vmatpush1.msra.mxu0 0.0
    %258 = vmatprep.subr.mxu0 0.0
    %259 = vmatpush1.msra.mxu0 0.0
    %260 = vmatprep.subr.mxu0 0.0
    %261 = vmatpush1.msra.mxu0 0.0
    %262 = vmatprep.subr.mxu0 0.0
    %263 = vmatpush1.msra.mxu0 0.0
    %264 = vmatprep.subr.mxu0 0.0
    %265 = vmatpush1.msra.mxu0 0.0
    %266 = vmatprep.subr.mxu0 0.0
    %267 = vmatpush1.msra.mxu0 0.0
    %268 = vmatprep.subr.mxu0 0.0
    %269 = vmatpush1.msra.mxu0 0.0
    %270 = vmatprep.subr.mxu0 0.0
    %271 = vmatpush1.msra.mxu0 0.0
    %272 = vmatprep.subr.mxu0 0.0
    %273 = vmatpush1.msra.mxu0 0.0
    %274 = vmatprep.subr.mxu0 0.0
    %275 = vmatpush1.msra.mxu0 0.0
    %276 = vmatprep.subr.mxu0 0.0
    %277 = vmatpush1.msra.mxu0 0.0
    %278 = vmatprep.subr.mxu0 0.0
    %279 = vmatpush1.msra.mxu0 0.0
    %280 = vmatprep.subr.mxu0 0.0
    %281 = vmatpush1.msra.mxu0 0.0
    %282 = vmatprep.subr.mxu0 0.0
    %283 = vmatpush1.msra.mxu0 0.0
    %284 = vmatprep.subr.mxu0 0.0
    %285 = vmatpush1.msra.mxu0 0.0
    %286 = vmatprep.subr.mxu0 0.0
    %287 = vmatpush1.msra.mxu0 0.0
    %288 = vmatprep.mubr.f32.mxu0 0.0
    %289 = vmatmul.mubr.f32.gmra.mrb[0].mxu0 0.0
    %v290 = vpop.f32.mrb[0].mxu0
    %v291 = vadd.f32 0.0, %v290
    %v292 = vpop.f32.mrb[0].mxu0
    %293 = vdwg.mxu0
    %v294 = vadd.f32 %v223, %v291
    %v295 = vmax.f32 %v294, 0.0
    %v296 = vmul.f32 %v295, 0.2
    %v297 = vadd.f32 %v296, 0.0
    %298 = vst [vmem:[#allocation9] sm:$0xff] %v297
    %v299 = vld [vmem:[#allocation2 + $0x8] sm:$0xff]
    %300 = vmatprep.subr.mxu0 0.0
    %301 = vmatpush1.msra.mxu0 %v207
    %302 = vmatprep.subr.mxu0 0.0
    %303 = vmatpush1.msra.mxu0 %v208
    %304 = vmatprep.subr.mxu0 0.0
    %305 = vmatpush1.msra.mxu0 %v209
    %306 = vmatprep.subr.mxu0 0.0
    %307 = vmatpush1.msra.mxu0 %v210
    %308 = vmatprep.subr.mxu0 0.0
    %309 = vmatpush1.msra.mxu0 %v211
    %310 = vmatprep.subr.mxu0 0.0
    %311 = vmatpush1.msra.mxu0 %v212
    %312 = vmatprep.subr.mxu0 0.0
    %313 = vmatpush1.msra.mxu0 %v213
    %314 = vmatprep.subr.mxu0 0.0
    %315 = vmatpush1.msra.mxu0 %v214
    %316 = vmatprep.subr.mxu0 0.0
    %317 = vmatpush1.msra.mxu0 %v215
    %318 = vmatprep.subr.mxu0 0.0
    %319 = vmatpush1.msra.mxu0 %v216
    %320 = vmatprep.subr.mxu0 0.0
    %321 = vmatpush1.msra.mxu0 %v217
    %322 = vmatprep.subr.mxu0 0.0
    %323 = vmatpush1.msra.mxu0 %v218
    %324 = vmatprep.subr.mxu0 0.0
    %325 = vmatpush1.msra.mxu0 %v219
    %326 = vmatprep.subr.mxu0 0.0
    %327 = vmatpush1.msra.mxu0 %v220
    %328 = vmatprep.subr.mxu0 0.0
    %329 = vmatpush1.msra.mxu0 %v221
    %330 = vmatprep.subr.mxu0 0.0
    %331 = vmatpush1.msra.mxu0 %v222
    %332 = vmatprep.subr.mxu0 0.0
    %333 = vmatpush1.msra.mxu0 0.0
    %334 = vmatprep.subr.mxu0 0.0
    %335 = vmatpush1.msra.mxu0 0.0
    %336 = vmatprep.subr.mxu0 0.0
    %337 = vmatpush1.msra.mxu0 0.0
    %338 = vmatprep.subr.mxu0 0.0
    %339 = vmatpush1.msra.mxu0 0.0
    %340 = vmatprep.subr.mxu0 0.0
    %341 = vmatpush1.msra.mxu0 0.0
    %342 = vmatprep.subr.mxu0 0.0
    %343 = vmatpush1.msra.mxu0 0.0
    %344 = vmatprep.subr.mxu0 0.0
    %345 = vmatpush1.msra.mxu0 0.0
    %346 = vmatprep.subr.mxu0 0.0
    %347 = vmatpush1.msra.mxu0 0.0
    %348 = vmatprep.subr.mxu0 0.0
    %349 = vmatpush1.msra.mxu0 0.0
    %350 = vmatprep.subr.mxu0 0.0
    %351 = vmatpush1.msra.mxu0 0.0
    %352 = vmatprep.subr.mxu0 0.0
    %353 = vmatpush1.msra.mxu0 0.0
    %354 = vmatprep.subr.mxu0 0.0
    %355 = vmatpush1.msra.mxu0 0.0
    %356 = vmatprep.subr.mxu0 0.0
    %357 = vmatpush1.msra.mxu0 0.0
    %358 = vmatprep.subr.mxu0 0.0
    %359 = vmatpush1.msra.mxu0 0.0
    %360 = vmatprep.subr.mxu0 0.0
    %361 = vmatpush1.msra.mxu0 0.0
    %362 = vmatprep.subr.mxu0 0.0
    %363 = vmatpush1.msra.mxu0 0.0
    %364 = vmatprep.mubr.f32.mxu0 0.0
    %365 = vmatmul.mubr.f32.gmra.mrb[0].mxu0 %v297
    %v366 = vpop.f32.mrb[0].mxu0
    %v367 = vadd.f32 0.0, %v366
    %v368 = vpop.f32.mrb[0].mxu0
    %369 = vdwg.mxu0
    %v370 = vadd.f32 %v299, %v367
    %v371 = vmul.f32 %v297, 0.8
    %v372 = vmax.f32 %v370, 0.0
    %v373 = vmul.f32 %v372, 0.2
    %v374 = vadd.f32 %v371, %v373
    %375 = vst [vmem:[#allocation9 + $0x8] sm:$0xff] %v374
    %v376 = vld [vmem:[#allocation2 + $0x10] sm:$0xff]
    %377 = vmatprep.subr.mxu0 0.0
    %378 = vmatpush1.msra.mxu0 %v207
    %379 = vmatprep.subr.mxu0 0.0
    %380 = vmatpush1.msra.mxu0 %v208
    %381 = vmatprep.subr.mxu0 0.0
    %382 = vmatpush1.msra.mxu0 %v209
    %383 = vmatprep.subr.mxu0 0.0
    %384 = vmatpush1.msra.mxu0 %v210
    %385 = vmatprep.subr.mxu0 0.0
    %386 = vmatpush1.msra.mxu0 %v211
    %387 = vmatprep.subr.mxu0 0.0
    %388 = vmatpush1.msra.mxu0 %v212
    %389 = vmatprep.subr.mxu0 0.0
    %390 = vmatpush1.msra.mxu0 %v213
    %391 = vmatprep.subr.mxu0 0.0
    %392 = vmatpush1.msra.mxu0 %v214
    %393 = vmatprep.subr.mxu0 0.0
    %394 = vmatpush1.msra.mxu0 %v215
    %395 = vmatprep.subr.mxu0 0.0
    %396 = vmatpush1.msra.mxu0 %v216
    %397 = vmatprep.subr.mxu0 0.0
    %398 = vmatpush1.msra.mxu0 %v217
    %399 = vmatprep.subr.mxu0 0.0
    %400 = vmatpush1.msra.mxu0 %v218
    %401 = vmatprep.subr.mxu0 0.0
    %402 = vmatpush1.msra.mxu0 %v219
    %403 = vmatprep.subr.mxu0 0.0
    %404 = vmatpush1.msra.mxu0 %v220
    %405 = vmatprep.subr.mxu0 0.0
    %406 = vmatpush1.msra.mxu0 %v221
    %407 = vmatprep.subr.mxu0 0.0
    %408 = vmatpush1.msra.mxu0 %v222
    %409 = vmatprep.subr.mxu0 0.0
    %410 = vmatpush1.msra.mxu0 0.0
    %411 = vmatprep.subr.mxu0 0.0
    %412 = vmatpush1.msra.mxu0 0.0
    %413 = vmatprep.subr.mxu0 0.0
    %414 = vmatpush1.msra.mxu0 0.0
    %415 = vmatprep.subr.mxu0 0.0
    %416 = vmatpush1.msra.mxu0 0.0
    %417 = vmatprep.subr.mxu0 0.0
    %418 = vmatpush1.msra.mxu0 0.0
    %419 = vmatprep.subr.mxu0 0.0
    %420 = vmatpush1.msra.mxu0 0.0
    %421 = vmatprep.subr.mxu0 0.0
    %422 = vmatpush1.msra.mxu0 0.0
    %423 = vmatprep.subr.mxu0 0.0
    %424 = vmatpush1.msra.mxu0 0.0
    %425 = vmatprep.subr.mxu0 0.0
    %426 = vmatpush1.msra.mxu0 0.0
    %427 = vmatprep.subr.mxu0 0.0
    %428 = vmatpush1.msra.mxu0 0.0
    %429 = vmatprep.subr.mxu0 0.0
    %430 = vmatpush1.msra.mxu0 0.0
    %431 = vmatprep.subr.mxu0 0.0
    %432 = vmatpush1.msra.mxu0 0.0
    %433 = vmatprep.subr.mxu0 0.0
    %434 = vmatpush1.msra.mxu0 0.0
    %435 = vmatprep.subr.mxu0 0.0
    %436 = vmatpush1.msra.mxu0 0.0
    %437 = vmatprep.subr.mxu0 0.0
    %438 = vmatpush1.msra.mxu0 0.0
    %439 = vmatprep.subr.mxu0 0.0
    %440 = vmatpush1.msra.mxu0 0.0
    %441 = vmatprep.mubr.f32.mxu0 0.0
    %442 = vmatmul.mubr.f32.gmra.mrb[0].mxu0 %v374
    %v443 = vpop.f32.mrb[0].mxu0
    %v444 = vadd.f32 0.0, %v443
    %v445 = vpop.f32.mrb[0].mxu0
    %446 = vdwg.mxu0
    %v447 = vadd.f32 %v376, %v444
    %v448 = vmul.f32 %v374, 0.8
    %v449 = vmax.f32 %v447, 0.0
    %v450 = vmul.f32 %v449, 0.2
    %v451 = vadd.f32 %v448, %v450
    %452 = vst [vmem:[#allocation9 + $0x10] sm:$0xff] %v451
    %v453 = vld [vmem:[#allocation2 + $0x18] sm:$0xff]
    %454 = vmatprep.subr.mxu0 0.0
    %455 = vmatpush1.msra.mxu0 %v207
    %456 = vmatprep.subr.mxu0 0.0
    %457 = vmatpush1.msra.mxu0 %v208
    %458 = vmatprep.subr.mxu0 0.0
    %459 = vmatpush1.msra.mxu0 %v209
    %460 = vmatprep.subr.mxu0 0.0
    %461 = vmatpush1.msra.mxu0 %v210
    %462 = vmatprep.subr.mxu0 0.0
    %463 = vmatpush1.msra.mxu0 %v211
    %464 = vmatprep.subr.mxu0 0.0
    %465 = vmatpush1.msra.mxu0 %v212
    %466 = vmatprep.subr.mxu0 0.0
    %467 = vmatpush1.msra.mxu0 %v213
    %468 = vmatprep.subr.mxu0 0.0
    %469 = vmatpush1.msra.mxu0 %v214
    %470 = vmatprep.subr.mxu0 0.0
    %471 = vmatpush1.msra.mxu0 %v215
    %472 = vmatprep.subr.mxu0 0.0
    %473 = vmatpush1.msra.mxu0 %v216
    %474 = vmatprep.subr.mxu0 0.0
    %475 = vmatpush1.msra.mxu0 %v217
    %476 = vmatprep.subr.mxu0 0.0
    %477 = vmatpush1.msra.mxu0 %v218
    %478 = vmatprep.subr.mxu0 0.0
    %479 = vmatpush1.msra.mxu0 %v219
    %480 = vmatprep.subr.mxu0 0.0
    %481 = vmatpush1.msra.mxu0 %v220
    %482 = vmatprep.subr.mxu0 0.0
    %483 = vmatpush1.msra.mxu0 %v221
    %484 = vmatprep.subr.mxu0 0.0
    %485 = vmatpush1.msra.mxu0 %v222
    %486 = vmatprep.subr.mxu0 0.0
    %487 = vmatpush1.msra.mxu0 0.0
    %488 = vmatprep.subr.mxu0 0.0
    %489 = vmatpush1.msra.mxu0 0.0
    %490 = vmatprep.subr.mxu0 0.0
    %491 = vmatpush1.msra.mxu0 0.0
    %492 = vmatprep.subr.mxu0 0.0
    %493 = vmatpush1.msra.mxu0 0.0
    %494 = vmatprep.subr.mxu0 0.0
    %495 = vmatpush1.msra.mxu0 0.0
    %496 = vmatprep.subr.mxu0 0.0
    %497 = vmatpush1.msra.mxu0 0.0
    %498 = vmatprep.subr.mxu0 0.0
    %499 = vmatpush1.msra.mxu0 0.0
    %500 = vmatprep.subr.mxu0 0.0
    %501 = vmatpush1.msra.mxu0 0.0
    %502 = vmatprep.subr.mxu0 0.0
    %503 = vmatpush1.msra.mxu0 0.0
    %504 = vmatprep.subr.mxu0 0.0
    %505 = vmatpush1.msra.mxu0 0.0
    %506 = vmatprep.subr.mxu0 0.0
    %507 = vmatpush1.msra.mxu0 0.0
    %508 = vmatprep.subr.mxu0 0.0
    %509 = vmatpush1.msra.mxu0 0.0
    %510 = vmatprep.subr.mxu0 0.0
    %511 = vmatpush1.msra.mxu0 0.0
    %512 = vmatprep.subr.mxu0 0.0
    %513 = vmatpush1.msra.mxu0 0.0
    %514 = vmatprep.subr.mxu0 0.0
    %515 = vmatpush1.msra.mxu0 0.0
    %516 = vmatprep.subr.mxu0 0.0
    %517 = vmatpush1.msra.mxu0 0.0
    %518 = vmatprep.mubr.f32.mxu0 0.0
    %519 = vmatmul.mubr.f32.gmra.mrb[0].mxu0 %v451
    %v520 = vpop.f32.mrb[0].mxu0
    %v521 = vadd.f32 0.0, %v520
    %v522 = vpop.f32.mrb[0].mxu0
    %523 = vdwg.mxu0
    %v524 = vadd.f32 %v453, %v521
    %v525 = vmul.f32 %v451, 0.8
    %v526 = vmax.f32 %v524, 0.0
    %v527 = vmul.f32 %v526, 0.2
    %v528 = vadd.f32 %v525, %v527
    %529 = vst [vmem:[#allocation9 + $0x18] sm:$0xff] %v528
    %v530 = vld [vmem:[#allocation2 + $0x20] sm:$0xff]
    %531 = vmatprep.subr.mxu0 0.0
    %532 = vmatpush1.msra.mxu0 %v207
    %533 = vmatprep.subr.mxu0 0.0
    %534 = vmatpush1.msra.mxu0 %v208
    %535 = vmatprep.subr.mxu0 0.0
    %536 = vmatpush1.msra.mxu0 %v209
    %537 = vmatprep.subr.mxu0 0.0
    %538 = vmatpush1.msra.mxu0 %v210
    %539 = vmatprep.subr.mxu0 0.0
    %540 = vmatpush1.msra.mxu0 %v211
    %541 = vmatprep.subr.mxu0 0.0
    %542 = vmatpush1.msra.mxu0 %v212
    %543 = vmatprep.subr.mxu0 0.0
    %544 = vmatpush1.msra.mxu0 %v213
    %545 = vmatprep.subr.mxu0 0.0
    %546 = vmatpush1.msra.mxu0 %v214
    %547 = vmatprep.subr.mxu0 0.0
    %548 = vmatpush1.msra.mxu0 %v215
    %549 = vmatprep.subr.mxu0 0.0
    %550 = vmatpush1.msra.mxu0 %v216
    %551 = vmatprep.subr.mxu0 0.0
    %552 = vmatpush1.msra.mxu0 %v217
    %553 = vmatprep.subr.mxu0 0.0
    %554 = vmatpush1.msra.mxu0 %v218
    %555 = vmatprep.subr.mxu0 0.0
    %556 = vmatpush1.msra.mxu0 %v219
    %557 = vmatprep.subr.mxu0 0.0
    %558 = vmatpush1.msra.mxu0 %v220
    %559 = vmatprep.subr.mxu0 0.0
    %560 = vmatpush1.msra.mxu0 %v221
    %561 = vmatprep.subr.mxu0 0.0
    %562 = vmatpush1.msra.mxu0 %v222
    %563 = vmatprep.subr.mxu0 0.0
    %564 = vmatpush1.msra.mxu0 0.0
    %565 = vmatprep.subr.mxu0 0.0
    %566 = vmatpush1.msra.mxu0 0.0
    %567 = vmatprep.subr.mxu0 0.0
    %568 = vmatpush1.msra.mxu0 0.0
    %569 = vmatprep.subr.mxu0 0.0
    %570 = vmatpush1.msra.mxu0 0.0
    %571 = vmatprep.subr.mxu0 0.0
    %572 = vmatpush1.msra.mxu0 0.0
    %573 = vmatprep.subr.mxu0 0.0
    %574 = vmatpush1.msra.mxu0 0.0
    %575 = vmatprep.subr.mxu0 0.0
    %576 = vmatpush1.msra.mxu0 0.0
    %577 = vmatprep.subr.mxu0 0.0
    %578 = vmatpush1.msra.mxu0 0.0
    %579 = vmatprep.subr.mxu0 0.0
    %580 = vmatpush1.msra.mxu0 0.0
    %581 = vmatprep.subr.mxu0 0.0
    %582 = vmatpush1.msra.mxu0 0.0
    %583 = vmatprep.subr.mxu0 0.0
    %584 = vmatpush1.msra.mxu0 0.0
    %585 = vmatprep.subr.mxu0 0.0
    %586 = vmatpush1.msra.mxu0 0.0
    %587 = vmatprep.subr.mxu0 0.0
    %588 = vmatpush1.msra.mxu0 0.0
    %589 = vmatprep.subr.mxu0 0.0
    %590 = vmatpush1.msra.mxu0 0.0
    %591 = vmatprep.subr.mxu0 0.0
    %592 = vmatpush1.msra.mxu0 0.0
    %593 = vmatprep.subr.mxu0 0.0
    %594 = vmatpush1.msra.mxu0 0.0
    %595 = vmatprep.mubr.f32.mxu0 0.0
    %596 = vmatmul.mubr.f32.gmra.mrb[0].mxu0 %v528
    %v597 = vpop.f32.mrb[0].mxu0
    %v598 = vadd.f32 0.0, %v597
    %v599 = vpop.f32.mrb[0].mxu0
    %600 = vdwg.mxu0
    %v601 = vadd.f32 %v530, %v598
    %v602 = vmul.f32 %v528, 0.8
    %v603 = vmax.f32 %v601, 0.0
    %v604 = vmul.f32 %v603, 0.2
    %v605 = vadd.f32 %v602, %v604
    %606 = vst [vmem:[#allocation9 + $0x20] sm:$0xff] %v605
    %v607 = vld [vmem:[#allocation2 + $0x28] sm:$0xff]
    %608 = vmatprep.subr.mxu0 0.0
    %609 = vmatpush1.msra.mxu0 %v207
    %610 = vmatprep.subr.mxu0 0.0
    %611 = vmatpush1.msra.mxu0 %v208
    %612 = vmatprep.subr.mxu0 0.0
    %613 = vmatpush1.msra.mxu0 %v209
    %614 = vmatprep.subr.mxu0 0.0
    %615 = vmatpush1.msra.mxu0 %v210
    %616 = vmatprep.subr.mxu0 0.0
    %617 = vmatpush1.msra.mxu0 %v211
    %618 = vmatprep.subr.mxu0 0.0
    %619 = vmatpush1.msra.mxu0 %v212
    %620 = vmatprep.subr.mxu0 0.0
    %621 = vmatpush1.msra.mxu0 %v213
    %622 = vmatprep.subr.mxu0 0.0
    %623 = vmatpush1.msra.mxu0 %v214
    %624 = vmatprep.subr.mxu0 0.0
    %625 = vmatpush1.msra.mxu0 %v215
    %626 = vmatprep.subr.mxu0 0.0
    %627 = vmatpush1.msra.mxu0 %v216
    %628 = vmatprep.subr.mxu0 0.0
    %629 = vmatpush1.msra.mxu0 %v217
    %630 = vmatprep.subr.mxu0 0.0
    %631 = vmatpush1.msra.mxu0 %v218
    %632 = vmatprep.subr.mxu0 0.0
    %633 = vmatpush1.msra.mxu0 %v219
    %634 = vmatprep.subr.mxu0 0.0
    %635 = vmatpush1.msra.mxu0 %v220
    %636 = vmatprep.subr.mxu0 0.0
    %637 = vmatpush1.msra.mxu0 %v221
    %638 = vmatprep.subr.mxu0 0.0
    %639 = vmatpush1.msra.mxu0 %v222
    %640 = vmatprep.subr.mxu0 0.0
    %641 = vmatpush1.msra.mxu0 0.0
    %642 = vmatprep.subr.mxu0 0.0
    %643 = vmatpush1.msra.mxu0 0.0
    %644 = vmatprep.subr.mxu0 0.0
    %645 = vmatpush1.msra.mxu0 0.0
    %646 = vmatprep.subr.mxu0 0.0
    %647 = vmatpush1.msra.mxu0 0.0
    %648 = vmatprep.subr.mxu0 0.0
    %649 = vmatpush1.msra.mxu0 0.0
    %650 = vmatprep.subr.mxu0 0.0
    %651 = vmatpush1.msra.mxu0 0.0
    %652 = vmatprep.subr.mxu0 0.0
    %653 = vmatpush1.msra.mxu0 0.0
    %654 = vmatprep.subr.mxu0 0.0
    %655 = vmatpush1.msra.mxu0 0.0
    %656 = vmatprep.subr.mxu0 0.0
    %657 = vmatpush1.msra.mxu0 0.0
    %658 = vmatprep.subr.mxu0 0.0
    %659 = vmatpush1.msra.mxu0 0.0
    %660 = vmatprep.subr.mxu0 0.0
    %661 = vmatpush1.msra.mxu0 0.0
    %662 = vmatprep.subr.mxu0 0.0
    %663 = vmatpush1.msra.mxu0 0.0
    %664 = vmatprep.subr.mxu0 0.0
    %665 = vmatpush1.msra.mxu0 0.0
    %666 = vmatprep.subr.mxu0 0.0
    %667 = vmatpush1.msra.mxu0 0.0
    %668 = vmatprep.subr.mxu0 0.0
    %669 = vmatpush1.msra.mxu0 0.0
    %670 = vmatprep.subr.mxu0 0.0
    %671 = vmatpush1.msra.mxu0 0.0
    %672 = vmatprep.mubr.f32.mxu0 0.0
    %673 = vmatmul.mubr.f32.gmra.mrb[0].mxu0 %v605
    %v674 = vpop.f32.mrb[0].mxu0
    %v675 = vadd.f32 0.0, %v674
    %v676 = vpop.f32.mrb[0].mxu0
    %677 = vdwg.mxu0
    %v678 = vadd.f32 %v607, %v675
    %v679 = vmul.f32 %v605, 0.8
    %v680 = vmax.f32 %v678, 0.0
    %v681 = vmul.f32 %v680, 0.2
    %v682 = vadd.f32 %v679, %v681
    %683 = vst [vmem:[#allocation9 + $0x28] sm:$0xff] %v682
    %v684 = vld [vmem:[#allocation2 + $0x30] sm:$0xff]
    %685 = vmatprep.subr.mxu0 0.0
    %686 = vmatpush1.msra.mxu0 %v207
    %687 = vmatprep.subr.mxu0 0.0
    %688 = vmatpush1.msra.mxu0 %v208
    %689 = vmatprep.subr.mxu0 0.0
    %690 = vmatpush1.msra.mxu0 %v209
    %691 = vmatprep.subr.mxu0 0.0
    %692 = vmatpush1.msra.mxu0 %v210
    %693 = vmatprep.subr.mxu0 0.0
    %694 = vmatpush1.msra.mxu0 %v211
    %695 = vmatprep.subr.mxu0 0.0
    %696 = vmatpush1.msra.mxu0 %v212
    %697 = vmatprep.subr.mxu0 0.0
    %698 = vmatpush1.msra.mxu0 %v213
    %699 = vmatprep.subr.mxu0 0.0
    %700 = vmatpush1.msra.mxu0 %v214
    %701 = vmatprep.subr.mxu0 0.0
    %702 = vmatpush1.msra.mxu0 %v215
    %703 = vmatprep.subr.mxu0 0.0
    %704 = vmatpush1.msra.mxu0 %v216
    %705 = vmatprep.subr.mxu0 0.0
    %706 = vmatpush1.msra.mxu0 %v217
    %707 = vmatprep.subr.mxu0 0.0
    %708 = vmatpush1.msra.mxu0 %v218
    %709 = vmatprep.subr.mxu0 0.0
    %710 = vmatpush1.msra.mxu0 %v219
    %711 = vmatprep.subr.mxu0 0.0
    %712 = vmatpush1.msra.mxu0 %v220
    %713 = vmatprep.subr.mxu0 0.0
    %714 = vmatpush1.msra.mxu0 %v221
    %715 = vmatprep.subr.mxu0 0.0
    %716 = vmatpush1.msra.mxu0 %v222
    %717 = vmatprep.subr.mxu0 0.0
    %718 = vmatpush1.msra.mxu0 0.0
    %719 = vmatprep.subr.mxu0 0.0
    %720 = vmatpush1.msra.mxu0 0.0
    %721 = vmatprep.subr.mxu0 0.0
    %722 = vmatpush1.msra.mxu0 0.0
    %723 = vmatprep.subr.mxu0 0.0
    %724 = vmatpush1.msra.mxu0 0.0
    %725 = vmatprep.subr.mxu0 0.0
    %726 = vmatpush1.msra.mxu0 0.0
    %727 = vmatprep.subr.mxu0 0.0
    %728 = vmatpush1.msra.mxu0 0.0
    %729 = vmatprep.subr.mxu0 0.0
    %730 = vmatpush1.msra.mxu0 0.0
    %731 = vmatprep.subr.mxu0 0.0
    %732 = vmatpush1.msra.mxu0 0.0
    %733 = vmatprep.subr.mxu0 0.0
    %734 = vmatpush1.msra.mxu0 0.0
    %735 = vmatprep.subr.mxu0 0.0
    %736 = vmatpush1.msra.mxu0 0.0
    %737 = vmatprep.subr.mxu0 0.0
    %738 = vmatpush1.msra.mxu0 0.0
    %739 = vmatprep.subr.mxu0 0.0
    %740 = vmatpush1.msra.mxu0 0.0
    %741 = vmatprep.subr.mxu0 0.0
    %742 = vmatpush1.msra.mxu0 0.0
    %743 = vmatprep.subr.mxu0 0.0
    %744 = vmatpush1.msra.mxu0 0.0
    %745 = vmatprep.subr.mxu0 0.0
    %746 = vmatpush1.msra.mxu0 0.0
    %747 = vmatprep.subr.mxu0 0.0
    %748 = vmatpush1.msra.mxu0 0.0
    %749 = vmatprep.mubr.f32.mxu0 0.0
    %750 = vmatmul.mubr.f32.gmra.mrb[0].mxu0 %v682
    %v751 = vpop.f32.mrb[0].mxu0
    %v752 = vadd.f32 0.0, %v751
    %v753 = vpop.f32.mrb[0].mxu0
    %754 = vdwg.mxu0
    %v755 = vadd.f32 %v684, %v752
    %v756 = vmul.f32 %v682, 0.8
    %v757 = vmax.f32 %v755, 0.0
    %v758 = vmul.f32 %v757, 0.2
    %v759 = vadd.f32 %v756, %v758
    %760 = vst [vmem:[#allocation9 + $0x30] sm:$0xff] %v759
    %v761 = vld [vmem:[#allocation2 + $0x38] sm:$0xff]
    %762 = vmatprep.subr.mxu0 0.0
    %763 = vmatpush1.msra.mxu0 %v207
    %764 = vmatprep.subr.mxu0 0.0
    %765 = vmatpush1.msra.mxu0 %v208
    %766 = vmatprep.subr.mxu0 0.0
    %767 = vmatpush1.msra.mxu0 %v209
    %768 = vmatprep.subr.mxu0 0.0
    %769 = vmatpush1.msra.mxu0 %v210
    %770 = vmatprep.subr.mxu0 0.0
    %771 = vmatpush1.msra.mxu0 %v211
    %772 = vmatprep.subr.mxu0 0.0
    %773 = vmatpush1.msra.mxu0 %v212
    %774 = vmatprep.subr.mxu0 0.0
    %775 = vmatpush1.msra.mxu0 %v213
    %776 = vmatprep.subr.mxu0 0.0
    %777 = vmatpush1.msra.mxu0 %v214
    %778 = vmatprep.subr.mxu0 0.0
    %779 = vmatpush1.msra.mxu0 %v215
    %780 = vmatprep.subr.mxu0 0.0
    %781 = vmatpush1.msra.mxu0 %v216
    %782 = vmatprep.subr.mxu0 0.0
    %783 = vmatpush1.msra.mxu0 %v217
    %784 = vmatprep.subr.mxu0 0.0
    %785 = vmatpush1.msra.mxu0 %v218
    %786 = vmatprep.subr.mxu0 0.0
    %787 = vmatpush1.msra.mxu0 %v219
    %788 = vmatprep.subr.mxu0 0.0
    %789 = vmatpush1.msra.mxu0 %v220
    %790 = vmatprep.subr.mxu0 0.0
    %791 = vmatpush1.msra.mxu0 %v221
    %792 = vmatprep.subr.mxu0 0.0
    %793 = vmatpush1.msra.mxu0 %v222
    %794 = vmatprep.subr.mxu0 0.0
    %795 = vmatpush1.msra.mxu0 0.0
    %796 = vmatprep.subr.mxu0 0.0
    %797 = vmatpush1.msra.mxu0 0.0
    %798 = vmatprep.subr.mxu0 0.0
    %799 = vmatpush1.msra.mxu0 0.0
    %800 = vmatprep.subr.mxu0 0.0
    %801 = vmatpush1.msra.mxu0 0.0
    %802 = vmatprep.subr.mxu0 0.0
    %803 = vmatpush1.msra.mxu0 0.0
    %804 = vmatprep.subr.mxu0 0.0
    %805 = vmatpush1.msra.mxu0 0.0
    %806 = vmatprep.subr.mxu0 0.0
    %807 = vmatpush1.msra.mxu0 0.0
    %808 = vmatprep.subr.mxu0 0.0
    %809 = vmatpush1.msra.mxu0 0.0
    %810 = vmatprep.subr.mxu0 0.0
    %811 = vmatpush1.msra.mxu0 0.0
    %812 = vmatprep.subr.mxu0 0.0
    %813 = vmatpush1.msra.mxu0 0.0
    %814 = vmatprep.subr.mxu0 0.0
    %815 = vmatpush1.msra.mxu0 0.0
    %816 = vmatprep.subr.mxu0 0.0
    %817 = vmatpush1.msra.mxu0 0.0
    %818 = vmatprep.subr.mxu0 0.0
    %819 = vmatpush1.msra.mxu0 0.0
    %820 = vmatprep.subr.mxu0 0.0
    %821 = vmatpush1.msra.mxu0 0.0
    %822 = vmatprep.subr.mxu0 0.0
    %823 = vmatpush1.msra.mxu0 0.0
    %824 = vmatprep.subr.mxu0 0.0
    %825 = vmatpush1.msra.mxu0 0.0
    %826 = vmatprep.mubr.f32.mxu0 0.0
    %827 = vmatmul.mubr.f32.gmra.mrb[0].mxu0 %v759
    %v828 = vpop.f32.mrb[0].mxu0
    %v829 = vadd.f32 0.0, %v828
    %v830 = vpop.f32.mrb[0].mxu0
    %831 = vdwg.mxu0
    %v832 = vadd.f32 %v761, %v829
    %v833 = vmul.f32 %v759, 0.8
    %v834 = vmax.f32 %v832, 0.0
    %v835 = vmul.f32 %v834, 0.2
    %v836 = vadd.f32 %v833, %v835
    %837 = vst [vmem:[#allocation9 + $0x38] sm:$0xff] %v836
    %v838 = vld [vmem:[#allocation9] sm:$0xff]
    %v839 = vld [vmem:[#allocation9 + $0x8] sm:$0xff]
    %v840 = vld [vmem:[#allocation9 + $0x10] sm:$0xff]
    %v841 = vld [vmem:[#allocation9 + $0x18] sm:$0xff]
    %v842 = vld [vmem:[#allocation9 + $0x20] sm:$0xff]
    %v843 = vld [vmem:[#allocation9 + $0x28] sm:$0xff]
    %v844 = vld [vmem:[#allocation9 + $0x30] sm:$0xff]
    %v845 = vld [vmem:[#allocation9 + $0x38] sm:$0xff]
    %v846 = vld [vmem:[#allocation6] sm:$0xff]
    %v847 = vld [vmem:[#allocation6 + $0x8] sm:$0xff]
    %v848 = vld [vmem:[#allocation6 + $0x10] sm:$0xff]
    %v849 = vld [vmem:[#allocation6 + $0x18] sm:$0xff]
    %v850 = vld [vmem:[#allocation6 + $0x20] sm:$0xff]
    %v851 = vld [vmem:[#allocation6 + $0x28] sm:$0xff]
    %v852 = vld [vmem:[#allocation6 + $0x30] sm:$0xff]
    %v853 = vld [vmem:[#allocation6 + $0x38] sm:$0xff]
    %v854 = vld [vmem:[#allocation6 + $0x40] sm:$0xff]
    %v855 = vld [vmem:[#allocation6 + $0x48] sm:$0xff]
    %v856 = vld [vmem:[#allocation6 + $0x50] sm:$0xff]
    %v857 = vld [vmem:[#allocation6 + $0x58] sm:$0xff]
    %v858 = vld [vmem:[#allocation6 + $0x60] sm:$0xff]
    %v859 = vld [vmem:[#allocation6 + $0x68] sm:$0xff]
    %v860 = vld [vmem:[#allocation6 + $0x70] sm:$0xff]
    %v861 = vld [vmem:[#allocation6 + $0x78] sm:$0xff]
    %862 = vmatprep.subr.mxu0 0.0
    %863 = vmatpush1.msra.mxu0 %v846
    %864 = vmatprep.subr.mxu0 0.0
    %865 = vmatpush1.msra.mxu0 %v847
    %866 = vmatprep.subr.mxu0 0.0
    %867 = vmatpush1.msra.mxu0 %v848
    %868 = vmatprep.subr.mxu0 0.0
    %869 = vmatpush1.msra.mxu0 %v849
    %870 = vmatprep.subr.mxu0 0.0
    %871 = vmatpush1.msra.mxu0 %v850
    %872 = vmatprep.subr.mxu0 0.0
    %873 = vmatpush1.msra.mxu0 %v851
    %874 = vmatprep.subr.mxu0 0.0
    %875 = vmatpush1.msra.mxu0 %v852
    %876 = vmatprep.subr.mxu0 0.0
    %877 = vmatpush1.msra.mxu0 %v853
    %878 = vmatprep.subr.mxu0 0.0
    %879 = vmatpush1.msra.mxu0 %v854
    %880 = vmatprep.subr.mxu0 0.0
    %881 = vmatpush1.msra.mxu0 %v855
    %882 = vmatprep.subr.mxu0 0.0
    %883 = vmatpush1.msra.mxu0 %v856
    %884 = vmatprep.subr.mxu0 0.0
    %885 = vmatpush1.msra.mxu0 %v857
    %886 = vmatprep.subr.mxu0 0.0
    %887 = vmatpush1.msra.mxu0 %v858
    %888 = vmatprep.subr.mxu0 0.0
    %889 = vmatpush1.msra.mxu0 %v859
    %890 = vmatprep.subr.mxu0 0.0
    %891 = vmatpush1.msra.mxu0 %v860
    %892 = vmatprep.subr.mxu0 0.0
    %893 = vmatpush1.msra.mxu0 %v861
    %894 = vmatprep.subr.mxu0 0.0
    %895 = vmatpush1.msra.mxu0 0.0
    %896 = vmatprep.subr.mxu0 0.0
    %897 = vmatpush1.msra.mxu0 0.0
    %898 = vmatprep.subr.mxu0 0.0
    %899 = vmatpush1.msra.mxu0 0.0
    %900 = vmatprep.subr.mxu0 0.0
    %901 = vmatpush1.msra.mxu0 0.0
    %902 = vmatprep.subr.mxu0 0.0
    %903 = vmatpush1.msra.mxu0 0.0
    %904 = vmatprep.subr.mxu0 0.0
    %905 = vmatpush1.msra.mxu0 0.0
    %906 = vmatprep.subr.mxu0 0.0
    %907 = vmatpush1.msra.mxu0 0.0
    %908 = vmatprep.subr.mxu0 0.0
    %909 = vmatpush1.msra.mxu0 0.0
    %910 = vmatprep.subr.mxu0 0.0
    %911 = vmatpush1.msra.mxu0 0.0
    %912 = vmatprep.subr.mxu0 0.0
    %913 = vmatpush1.msra.mxu0 0.0
    %914 = vmatprep.subr.mxu0 0.0
    %915 = vmatpush1.msra.mxu0 0.0
    %916 = vmatprep.subr.mxu0 0.0
    %917 = vmatpush1.msra.mxu0 0.0
    %918 = vmatprep.subr.mxu0 0.0
    %919 = vmatpush1.msra.mxu0 0.0
    %920 = vmatprep.subr.mxu0 0.0
    %921 = vmatpush1.msra.mxu0 0.0
    %922 = vmatprep.subr.mxu0 0.0
    %923 = vmatpush1.msra.mxu0 0.0
    %924 = vmatprep.subr.mxu0 0.0
    %925 = vmatpush1.msra.mxu0 0.0
    %926 = vmatprep.mubr.f32.mxu0 0.0
    %927 = vmatmul.mubr.f32.gmra.mrb[0].mxu0 %v838
    %v928 = vpop.f32.mrb[0].mxu0
    %v929 = vadd.f32 0.0, %v928
    %v930 = vpop.f32.mrb[0].mxu0
    %931 = vmatprep.mubr.f32.mxu0 0.0
    %932 = vmatmul.mubr.f32.gmra.mrb[0].mxu0 %v839
    %v933 = vpop.f32.mrb[0].mxu0
    %v934 = vadd.f32 0.0, %v933
    %v935 = vpop.f32.mrb[0].mxu0
    %936 = vmatprep.mubr.f32.mxu0 0.0
    %937 = vmatmul.mubr.f32.gmra.mrb[0].mxu0 %v840
    %v938 = vpop.f32.mrb[0].mxu0
    %v939 = vadd.f32 0.0, %v938
    %v940 = vpop.f32.mrb[0].mxu0
    %941 = vmatprep.mubr.f32.mxu0 0.0
    %942 = vmatmul.mubr.f32.gmra.mrb[0].mxu0 %v841
    %v943 = vpop.f32.mrb[0].mxu0
    %v944 = vadd.f32 0.0, %v943
    %v945 = vpop.f32.mrb[0].mxu0
    %946 = vmatprep.mubr.f32.mxu0 0.0
    %947 = vmatmul.mubr.f32.gmra.mrb[0].mxu0 %v842
    %v948 = vpop.f32.mrb[0].mxu0
    %v949 = vadd.f32 0.0, %v948
    %v950 = vpop.f32.mrb[0].mxu0
    %951 = vmatprep.mubr.f32.mxu0 0.0
    %952 = vmatmul.mubr.f32.gmra.mrb[0].mxu0 %v843
    %v953 = vpop.f32.mrb[0].mxu0
    %v954 = vadd.f32 0.0, %v953
    %v955 = vpop.f32.mrb[0].mxu0
    %956 = vmatprep.mubr.f32.mxu0 0.0
    %957 = vmatmul.mubr.f32.gmra.mrb[0].mxu0 %v844
    %v958 = vpop.f32.mrb[0].mxu0
    %v959 = vadd.f32 0.0, %v958
    %v960 = vpop.f32.mrb[0].mxu0
    %961 = vmatprep.mubr.f32.mxu0 0.0
    %962 = vmatmul.mubr.f32.gmra.mrb[0].mxu0 %v845
    %v963 = vpop.f32.mrb[0].mxu0
    %v964 = vadd.f32 0.0, %v963
    %v965 = vpop.f32.mrb[0].mxu0
    %966 = vdwg.mxu0
    %967 = vst [vmem:[#allocation8] sm:$0xff] %v929
    %968 = vst [vmem:[#allocation8 + $0x8] sm:$0xff] %v934
    %969 = vst [vmem:[#allocation8 + $0x10] sm:$0xff] %v939
    %970 = vst [vmem:[#allocation8 + $0x18] sm:$0xff] %v944
    %971 = vst [vmem:[#allocation8 + $0x20] sm:$0xff] %v949
    %972 = vst [vmem:[#allocation8 + $0x28] sm:$0xff] %v954
    %973 = vst [vmem:[#allocation8 + $0x30] sm:$0xff] %v959
    %974 = vst [vmem:[#allocation8 + $0x38] sm:$0xff] %v964
    // Predicated region
    $region30: #{tpu_custom_call.1} parent=1 // pred_check
      _
    $region31: #{tpu_custom_call.1} parent=1 // pred_check_branch
      %976 = sbr.rel (0) target = $region33
    $region32: #{tpu_custom_call.1} parent=1 // pred_region
      %s978 = ssub.s32 1024, 1024
      %979 = vsyncadd [#allocation5], %s978
      %s980 = sshll.u32 [#allocation8], 4
      %s981 = int_to_ptr.vmem [resolvable:$true] %s980
      %986 = dma.vmem_to_hbm [thread:$0]  %s981, 1024, %s5, [#allocation5], 128, 128, 8
    $region33: #{tpu_custom_call.1} parent=1 // pred_fallthru
      _
    // Predicated region
    $region34: #{tpu_custom_call.1} parent=1 // pred_check
      _
    $region35: #{tpu_custom_call.1} parent=1 // pred_check_branch
      %988 = sbr.rel (0) target = $region37
    $region36: #{tpu_custom_call.1} parent=1 // pred_region
      %s990 = ssub.s32 1024, 1024
      %991 = vsyncadd [#allocation10], %s990
      %s992 = sshll.u32 [#allocation9], 4
      %s993 = int_to_ptr.vmem [resolvable:$true] %s992
      %998 = dma.vmem_to_hbm [thread:$0]  %s993, 1024, %s6, [#allocation10], 128, 128, 8
    $region37: #{tpu_custom_call.1} parent=1 // pred_fallthru
      _
    // Predicated region
    $region38: #{tpu_custom_call.1} parent=1 // pred_check
      _
    $region39: #{tpu_custom_call.1} parent=1 // pred_check_branch
      %1000 = sbr.rel (0) target = $region41
    $region40: #{tpu_custom_call.1} parent=1 // pred_region
      %1001 = dma.done [#allocation5], 1024
    $region41: #{tpu_custom_call.1} parent=1 // pred_fallthru
      _
    // Predicated region
    $region42: #{tpu_custom_call.1} parent=1 // pred_check
      _
    $region43: #{tpu_custom_call.1} parent=1 // pred_check_branch
      %1003 = sbr.rel (0) target = $region45
    $region44: #{tpu_custom_call.1} parent=1 // pred_region
      %1004 = dma.done [#allocation10], 1024
    $region45: #{tpu_custom_call.1} parent=1 // pred_fallthru
      _
    %1005 = vsyncpa [#allocation4], 1
    %1006 = vsyncpa [#allocation7], 1
    %1007 = vsyncpa [#allocation5], 1
    %1008 = vsyncpa [#allocation10], 1

</llo_original>
